<compile_context>
chip_gen: v7x
topology: tpu7x:2x2x1
jax: 0.10.0
libtpu: 0.0.40
codegen_flags: <defaults>
</compile_context>

<pallas_src>
import functools

import jax
import jax.numpy as jnp
from jax.experimental import pallas as pl
from jax.experimental.pallas import tpu as pltpu


def _round_up(x, m):
    return ((x + m - 1) // m) * m


def _attention_kernel(x_ref, w1_ref, b1_ref, w2_ref, b2_ref, o_ref):
    # x_ref : (B_BLK, S, D)   w1_ref: (D, H)   b1_ref: (1, H)
    # w2_ref: (1, H)  (row form of the (H, 1) linear2 weight)
    # b2_ref: (1, 1)           o_ref : (B_BLK, D)
    blk, S, D = x_ref.shape
    H = w1_ref.shape[1]

    x = x_ref[...]                                   # (B_BLK, S, D), f32

    # ---- linear1 + tanh: one MXU matmul over the whole batch block ----
    x2d = x.reshape(blk * S, D)                      # collapse leading dims
    h = jnp.tanh(
        jnp.dot(x2d, w1_ref[...], preferred_element_type=jnp.float32)
        + b1_ref[...]                                # (1, H) broadcast
    )                                                # (B_BLK*S, H)

    # ---- linear2 (N=1) as VPU multiply + lane reduction ----
    h3 = h.reshape(blk, S, H)
    scores = jnp.sum(h3 * w2_ref[...], axis=-1) + b2_ref[...]   # (B_BLK, S)

    # ---- softmax over the sequence axis (lane-dense) ----
    m = jnp.max(scores, axis=-1, keepdims=True)      # (B_BLK, 1)
    e = jnp.exp(scores - m)                          # (B_BLK, S)
    denom = jnp.sum(e, axis=-1, keepdims=True)       # (B_BLK, 1)

    # ---- weighted sum over S as an MXU batched matmul ----
    # (B_BLK, 1, S) @ (B_BLK, S, D) -> (B_BLK, 1, D)
    pooled = jnp.einsum(
        "bqs,bsd->bqd", e[:, None, :], x, preferred_element_type=jnp.float32
    )[:, 0, :]                                       # (B_BLK, D)

    # Fold the softmax normalization into the final (B_BLK, D) result only.
    out = pooled * pl.reciprocal(denom, approx=True)
    o_ref[...] = out.astype(o_ref.dtype)


def _choose_batch_block(B, S, D):
    """Pick a sublane-aligned batch block that keeps the double-buffered
    x slab well inside the smallest scoped-VMEM budget (v7x / v5e)."""
    budget = 8 << 20                       # bytes for the pipelined x block
    per_row = S * D * 4                    # f32 bytes per batch row
    blk = budget // max(2 * per_row, 1)    # double-buffered
    blk = max(8, min(int(blk), 128))
    b_pad8 = _round_up(B, 8)
    if b_pad8 >= 16:
        # keep at least 2 grid steps so the 2 TensorCores on v7x both get work
        blk = min(blk, _round_up(b_pad8 // 2, 8))
    else:
        blk = min(blk, b_pad8)
    return max(8, (blk // 8) * 8)


@functools.partial(jax.jit, static_argnames=())
def attention_module(x, w1, b1, w2, b2):
    """x: (B, S, D) f32; w1: (D, H); b1: (H,); w2: (H, 1); b2: (1,).
    Returns (B, D) f32, matching AttentionModule.forward."""
    B, S, D = x.shape
    H = w1.shape[1]

    b1_r = jnp.asarray(b1).reshape(1, H)
    w2_row = jnp.asarray(w2).reshape(1, H)   # (H, 1) -> (1, H) row
    b2_r = jnp.asarray(b2).reshape(1, 1)

    blk = _choose_batch_block(B, S, D)
    B_pad = _round_up(B, blk)
    if B_pad != B:
        x_in = jnp.zeros((B_pad, S, D), x.dtype).at[:B].set(x)
    else:
        x_in = x

    grid = (B_pad // blk,)

    # VMEM budget: double-buffered x + out blocks, weights (DMA'd once), slack.
    vmem_bytes = 4 * (2 * blk * S * D + 2 * blk * D + 2 * (D * H + 2 * H + 1))
    vmem_limit = int(min(max(2 * vmem_bytes, 4 << 20), 48 << 20))

    out = pl.pallas_call(
        _attention_kernel,
        out_shape=jax.ShapeDtypeStruct((B_pad, D), x.dtype),
        grid_spec=pltpu.PrefetchScalarGridSpec(
            num_scalar_prefetch=0,
            grid=grid,
            in_specs=[
                pl.BlockSpec((blk, S, D), lambda i: (i, 0, 0)),  # x batch block
                pl.BlockSpec((D, H), lambda i: (0, 0)),          # w1 (shared)
                pl.BlockSpec((1, H), lambda i: (0, 0)),          # b1 (shared)
                pl.BlockSpec((1, H), lambda i: (0, 0)),          # w2 row (shared)
                pl.BlockSpec((1, 1), lambda i: (0, 0)),          # b2 (shared)
            ],
            out_specs=pl.BlockSpec((blk, D), lambda i: (i, 0)),
        ),
        compiler_params=pltpu.CompilerParams(
            dimension_semantics=("parallel",),
            vmem_limit_bytes=vmem_limit,
        ),
    )(x_in, w1, b1_r, w2_row, b2_r)

    return out[:B]


def _reference(x, w1, b1, w2, b2):
    h = jnp.tanh(x @ w1 + b1)                # (B, S, H)
    scores = h @ w2 + b2                     # (B, S, 1)
    attn = jax.nn.softmax(scores, axis=1)    # softmax over the sequence axis
    return jnp.sum(x * attn, axis=1)         # (B, D)


if __name__ == "__main__":
    # Small shapes consistent with the module's forward.
    B, S, D, H = 16, 8, 16, 32

    key = jax.random.PRNGKey(0)
    kx, kw1, kb1, kw2, kb2 = jax.random.split(key, 5)

    x = jax.random.normal(kx, (B, S, D), dtype=jnp.float32)
    w1 = jax.random.normal(kw1, (D, H), dtype=jnp.float32) * 0.1
    b1 = jax.random.normal(kb1, (H,), dtype=jnp.float32) * 0.1
    w2 = jax.random.normal(kw2, (H, 1), dtype=jnp.float32) * 0.1
    b2 = jax.random.normal(kb2, (1,), dtype=jnp.float32) * 0.1

    out = attention_module(x, w1, b1, w2, b2)
    out = jax.block_until_ready(out)

    ref = _reference(x, w1, b1, w2, b2)
    assert out.shape == (B, D), out.shape
    max_err = jnp.max(jnp.abs(out - ref))
    # Tolerance accommodates the EUP approximate reciprocal in the softmax.
    assert jnp.allclose(out, ref, atol=2e-3, rtol=2e-3), f"max abs err {max_err}"

    print("KERNEL_OK")
</pallas_src>

<mosaic_0001>
module attributes {stable_mosaic.version = 11 : i64} {
  func.func @_attention_kernel(%arg0: i32, %arg1: memref<8x8x16xf32, #tpu.memory_space<vmem>>, %arg2: memref<16x32xf32, #tpu.memory_space<vmem>>, %arg3: memref<1x32xf32, #tpu.memory_space<vmem>>, %arg4: memref<1x32xf32, #tpu.memory_space<vmem>>, %arg5: memref<1x1xf32, #tpu.memory_space<vmem>>, %arg6: memref<8x16xf32, #tpu.memory_space<vmem>>) attributes {dimension_semantics = [#tpu.dimension_semantics<parallel>], iteration_bounds = array<i64: 2>, scalar_prefetch = 0 : i64, scratch_operands = 0 : i64, tpu.core_type = #tpu.core_type<tc>, window_params = [{transform_indices = @transform_0, window_bounds = array<i64: 8, 8, 16>}, {pipeline_mode = #tpu.pipeline_mode<synchronous>, transform_indices = @transform_1, window_bounds = array<i64: 16, 32>}, {pipeline_mode = #tpu.pipeline_mode<synchronous>, transform_indices = @transform_2, window_bounds = array<i64: 1, 32>}, {pipeline_mode = #tpu.pipeline_mode<synchronous>, transform_indices = @transform_3, window_bounds = array<i64: 1, 32>}, {pipeline_mode = #tpu.pipeline_mode<synchronous>, transform_indices = @transform_4, window_bounds = array<i64: 1, 1>}, {transform_indices = @transform_5, window_bounds = array<i64: 8, 16>}]} {
    %c0 = arith.constant 0 : index
    %c0_0 = arith.constant 0 : index
    %c0_1 = arith.constant 0 : index
    %0 = vector.load %arg1[%c0, %c0_0, %c0_1] : memref<8x8x16xf32, #tpu.memory_space<vmem>>, vector<8x8x16xf32>
    %1 = vector.shape_cast %0 : vector<8x8x16xf32> to vector<64x16xf32>
    %c0_2 = arith.constant 0 : index
    %c0_3 = arith.constant 0 : index
    %2 = vector.load %arg2[%c0_2, %c0_3] : memref<16x32xf32, #tpu.memory_space<vmem>>, vector<16x32xf32>
    %cst = arith.constant dense<0.000000e+00> : vector<64x32xf32>
    %3 = tpu.matmul %1, %2, %cst {dimension_numbers = #tpu.dot_dimension_numbers<[1], [0], [0], [1], [0, 0, 1, 1], [], []>} : vector<64x16xf32>, vector<16x32xf32>, vector<64x32xf32> -> vector<64x32xf32>
    %c0_4 = arith.constant 0 : index
    %c0_5 = arith.constant 0 : index
    %4 = vector.load %arg3[%c0_4, %c0_5] : memref<1x32xf32, #tpu.memory_space<vmem>>, vector<1x32xf32>
    %5 = vector.broadcast %4 : vector<1x32xf32> to vector<64x32xf32>
    %6 = arith.addf %3, %5 : vector<64x32xf32>
    %7 = math.tanh %6 : vector<64x32xf32>
    %8 = vector.shape_cast %7 : vector<64x32xf32> to vector<8x8x32xf32>
    %c0_6 = arith.constant 0 : index
    %c0_7 = arith.constant 0 : index
    %9 = vector.load %arg4[%c0_6, %c0_7] : memref<1x32xf32, #tpu.memory_space<vmem>>, vector<1x32xf32>
    %10 = vector.shape_cast %9 : vector<1x32xf32> to vector<1x1x32xf32>
    %11 = vector.broadcast %10 : vector<1x1x32xf32> to vector<8x8x32xf32>
    %12 = arith.mulf %8, %11 : vector<8x8x32xf32>
    %cst_8 = arith.constant dense<0.000000e+00> : vector<8x8xf32>
    %13 = vector.multi_reduction <add>, %12, %cst_8 [2] : vector<8x8x32xf32> to vector<8x8xf32>
    %c0_9 = arith.constant 0 : index
    %c0_10 = arith.constant 0 : index
    %14 = vector.load %arg5[%c0_9, %c0_10] : memref<1x1xf32, #tpu.memory_space<vmem>>, vector<1x1xf32>
    %15 = vector.broadcast %14 : vector<1x1xf32> to vector<8x8xf32>
    %16 = arith.addf %13, %15 : vector<8x8xf32>
    %cst_11 = arith.constant dense<0xFF800000> : vector<8xf32>
    %17 = vector.multi_reduction <maximumf>, %16, %cst_11 [1] : vector<8x8xf32> to vector<8xf32>
    %18 = vector.shape_cast %17 : vector<8xf32> to vector<8x1xf32>
    %19 = vector.broadcast %18 : vector<8x1xf32> to vector<8x8xf32>
    %20 = arith.subf %16, %19 : vector<8x8xf32>
    %21 = math.exp %20 : vector<8x8xf32>
    %cst_12 = arith.constant dense<0.000000e+00> : vector<8xf32>
    %22 = vector.multi_reduction <add>, %21, %cst_12 [1] : vector<8x8xf32> to vector<8xf32>
    %23 = vector.shape_cast %22 : vector<8xf32> to vector<8x1xf32>
    %24 = vector.shape_cast %21 : vector<8x8xf32> to vector<8x1x8xf32>
    "tpu.trace_start"() <{level = 10 : i32, message = "bqs,bsd->bqd"}> : () -> ()
    %cst_13 = arith.constant dense<0.000000e+00> : vector<8x1x16xf32>
    %25 = tpu.matmul %24, %0, %cst_13 {dimension_numbers = #tpu.dot_dimension_numbers<[2], [1], [1], [2], [0, 0, 0, 1, 1, 2], [0], [0]>} : vector<8x1x8xf32>, vector<8x8x16xf32>, vector<8x1x16xf32> -> vector<8x1x16xf32>
    "tpu.trace_stop"() : () -> ()
    %26 = vector.shape_cast %25 : vector<8x1x16xf32> to vector<8x16xf32>
    %27 = tpu.reciprocal %23 {approx = true} : vector<8x1xf32> -> vector<8x1xf32>
    %28 = vector.broadcast %27 : vector<8x1xf32> to vector<8x16xf32>
    %29 = arith.mulf %26, %28 : vector<8x16xf32>
    %c0_14 = arith.constant 0 : index
    %c0_15 = arith.constant 0 : index
    %30 = vector.load %arg6[%c0_14, %c0_15] : memref<8x16xf32, #tpu.memory_space<vmem>>, vector<8x16xf32>
    tpu.vector_store %arg6[%c0_14, %c0_15], %29 {strides = array<i32>} : memref<8x16xf32, #tpu.memory_space<vmem>>, vector<8x16xf32>,
    return
  }
  func.func @transform_0(%arg0: i32) -> (i32, i32, i32) {
    %c0_i32 = arith.constant 0 : i32
    %c0_i32_0 = arith.constant 0 : i32
    %c0_i32_1 = arith.constant 0 : i32
    return %arg0, %c0_i32, %c0_i32_0 : i32, i32, i32
  }
  func.func @transform_1(%arg0: i32) -> (i32, i32) {
    %c0_i32 = arith.constant 0 : i32
    %c0_i32_0 = arith.constant 0 : i32
    %c0_i32_1 = arith.constant 0 : i32
    return %c0_i32, %c0_i32_0 : i32, i32
  }
  func.func @transform_2(%arg0: i32) -> (i32, i32) {
    %c0_i32 = arith.constant 0 : i32
    %c0_i32_0 = arith.constant 0 : i32
    %c0_i32_1 = arith.constant 0 : i32
    return %c0_i32, %c0_i32_0 : i32, i32
  }
  func.func @transform_3(%arg0: i32) -> (i32, i32) {
    %c0_i32 = arith.constant 0 : i32
    %c0_i32_0 = arith.constant 0 : i32
    %c0_i32_1 = arith.constant 0 : i32
    return %c0_i32, %c0_i32_0 : i32, i32
  }
  func.func @transform_4(%arg0: i32) -> (i32, i32) {
    %c0_i32 = arith.constant 0 : i32
    %c0_i32_0 = arith.constant 0 : i32
    %c0_i32_1 = arith.constant 0 : i32
    return %c0_i32, %c0_i32_0 : i32, i32
  }
  func.func @transform_5(%arg0: i32) -> (i32, i32) {
    %c0_i32 = arith.constant 0 : i32
    %c0_i32_0 = arith.constant 0 : i32
    return %arg0, %c0_i32 : i32, i32
  }
}

</mosaic_0001>

<llo_original>
// kernel: attention_module.1
$region0: #{attention_module.1}
  #allocation0 [shape = 'u32[]', space=smem, size = 0x4, offset = 0x4, fixed_abs, tag = 'smem constant byte address 0x4 - core index']
  #allocation1 [shape = 'u32[144,128]{1,0:T(1,128)}', space=vmem, size = 0x12000, scoped, tag = 'internal scratch']
  #allocation2 [shape = 'f32[1,1]{1,0:T(1,128)S(1)}', space=vmem, size = 0x200, scoped, tag = 'scoped memory for attention_module.1']
  %s0 = inlined_call_operand.hbm [shape: f32[16,8,16], index: 0, kind: input, shape index: {}]
  %s1 = inlined_call_operand.vmem [shape: f32[16,32], index: 1, kind: input, shape index: {}]
  %s2 = inlined_call_operand.vmem [shape: f32[1,32], index: 2, kind: input, shape index: {}]
  %s3 = inlined_call_operand.vmem [shape: f32[1,32], index: 3, kind: input, shape index: {}]
  %s4 = inlined_call_operand.<no memory space> [shape: f32[1,1], index: 4, kind: input, shape index: {}]
  %s5 = inlined_call_operand.hbm [shape: f32[16,16], index: 5, kind: output, shape index: {}]
  %s6 = sld [smem:[#allocation0]]
  $region57: #{attention_module.1} parent=0
    _
  %s8 = ssub.s32 1, %s6
  %s9 = scalar_select 0, %s8, %s6
  %v10 = vstv %s4
  %11 = vst [vmem:[#allocation2] sm:$0x1] %v10
  $region1: #{attention_module.1} parent=0
    #allocation3 [shape = 'u8[65536]{0}', space=vmem, size = 0x10000, scoped, tag = 'input window, operand 0']
    #allocation4 [shape = 's32[2]{0}', space=sflag, size = 0x8, scoped, tag = 'scoped memory for attention_module.1']
    #allocation5 [shape = 's32[2]{0}', space=sflag, size = 0x8, scoped, tag = 'scoped memory for attention_module.1']
    #allocation6 [shape = 'u8[8192]{0}', space=vmem, size = 0x2000, scoped, tag = 'output window, operand 0']
    %12 = vsyncpa [#allocation4], 0
    %s13 = scalar_lea.sflag [#allocation4], 1
    %14 = vsyncpa %s13, 0
    %15 = vsyncpa [#allocation5], 0
    %s16 = scalar_lea.sflag [#allocation5], 1
    %17 = vsyncpa %s16, 0
    loop: start=0, step=1, limit=4
    $region2: #{attention_module.1} parent=1 // loop_pre_header
      _
    $region3: #{attention_module.1} parent=1 // loop_header
      %s19 = sphi 0, %s23
      %p20 = scmp.ge.s32.totalorder %s19, 4
      %s29 = sphi 0, %s31
      %s32 = sphi 0, %s29
      %s33 = sphi 0, %s32
      %s49 = sphi 0, %s33
      %s53 = sphi 0, %s53
      %s55 = sphi 0, %s53
      %s56 = sphi 0, %s55
      %s70 = sphi 0, %s56
      %s74 = sphi 0, %s74
      %s76 = sphi 0, %s74
      %s77 = sphi 0, %s76
      %s91 = sphi 0, %s77
      %s95 = sphi 0, %s95
      %s97 = sphi 0, %s95
      %s98 = sphi 0, %s97
      %s112 = sphi 0, %s98
      %s116 = sphi 0, %s116
      %s118 = sphi 0, %s116
      %s119 = sphi 0, %s118
      %s133 = sphi 0, %s119
      %s139 = sphi 0, %s141
      %s142 = sphi 0, %s139
      %s143 = sphi 0, %s142
      %s159 = sphi 0, %s143
    $region4: #{attention_module.1} parent=1 // loop_header_branch
      %22 = sbr.rel (%p20) target = $region8
    $region5: #{attention_module.1} parent=1 // loop_body
      %s24 = ssub.s32 %s19, 1
      %s25 = ssub.s32 %s19, 2
      %s26 = sadd.s32 %s19, 1
      %s27 = ssub.s32 %s19, %s26
      %p28 = scmp.eq.s32.totalorder %s27, 0
      %s30 = sadd.s32 %s29, 1
      %s31 = scalar_select %p28, %s29, %s30
      %p34 = pneg %p28
      %p35 = scmp.eq.s32.totalorder %s19, 1
      %p36 = por %p34, %p35
      %p37 = scmp.ne.s32.totalorder %s29, %s32
      %p38 = scmp.eq.s32.totalorder %s19, 0
      %p39 = por %p37, %p38
      %p40 = scmp.ne.s32.totalorder %s29, %s32
      %p41 = scmp.eq.s32.totalorder %s24, 1
      %p42 = por %p40, %p41
      %p43 = scmp.ne.s32.totalorder %s32, %s33
      %p44 = scmp.eq.s32.totalorder %s24, 0
      %p45 = por %p43, %p44
      %p46 = scmp.ne.s32.totalorder %s32, %s33
      %p47 = scmp.eq.s32.totalorder %s25, 1
      %p48 = por %p46, %p47
      %p50 = scmp.ne.s32.totalorder %s33, %s49
      %p51 = scmp.eq.s32.totalorder %s25, 0
      %p52 = por %p50, %p51
      %s54 = sadd.s32 %s53, 1
      %p57 = scmp.eq.s32.totalorder %s19, 1
      %p58 = scmp.ne.s32.totalorder %s53, %s55
      %p59 = scmp.eq.s32.totalorder %s19, 0
      %p60 = por %p58, %p59
      %p61 = scmp.ne.s32.totalorder %s53, %s55
      %p62 = scmp.eq.s32.totalorder %s24, 1
      %p63 = por %p61, %p62
      %p64 = scmp.ne.s32.totalorder %s55, %s56
      %p65 = scmp.eq.s32.totalorder %s24, 0
      %p66 = por %p64, %p65
      %p67 = scmp.ne.s32.totalorder %s55, %s56
      %p68 = scmp.eq.s32.totalorder %s25, 1
      %p69 = por %p67, %p68
      %p71 = scmp.ne.s32.totalorder %s56, %s70
      %p72 = scmp.eq.s32.totalorder %s25, 0
      %p73 = por %p71, %p72
      %s75 = sadd.s32 %s74, 1
      %p78 = scmp.eq.s32.totalorder %s19, 1
      %p79 = scmp.ne.s32.totalorder %s74, %s76
      %p80 = scmp.eq.s32.totalorder %s19, 0
      %p81 = por %p79, %p80
      %p82 = scmp.ne.s32.totalorder %s74, %s76
      %p83 = scmp.eq.s32.totalorder %s24, 1
      %p84 = por %p82, %p83
      %p85 = scmp.ne.s32.totalorder %s76, %s77
      %p86 = scmp.eq.s32.totalorder %s24, 0
      %p87 = por %p85, %p86
      %p88 = scmp.ne.s32.totalorder %s76, %s77
      %p89 = scmp.eq.s32.totalorder %s25, 1
      %p90 = por %p88, %p89
      %p92 = scmp.ne.s32.totalorder %s77, %s91
      %p93 = scmp.eq.s32.totalorder %s25, 0
      %p94 = por %p92, %p93
      %s96 = sadd.s32 %s95, 1
      %p99 = scmp.eq.s32.totalorder %s19, 1
      %p100 = scmp.ne.s32.totalorder %s95, %s97
      %p101 = scmp.eq.s32.totalorder %s19, 0
      %p102 = por %p100, %p101
      %p103 = scmp.ne.s32.totalorder %s95, %s97
      %p104 = scmp.eq.s32.totalorder %s24, 1
      %p105 = por %p103, %p104
      %p106 = scmp.ne.s32.totalorder %s97, %s98
      %p107 = scmp.eq.s32.totalorder %s24, 0
      %p108 = por %p106, %p107
      %p109 = scmp.ne.s32.totalorder %s97, %s98
      %p110 = scmp.eq.s32.totalorder %s25, 1
      %p111 = por %p109, %p110
      %p113 = scmp.ne.s32.totalorder %s98, %s112
      %p114 = scmp.eq.s32.totalorder %s25, 0
      %p115 = por %p113, %p114
      %s117 = sadd.s32 %s116, 1
      %p120 = scmp.eq.s32.totalorder %s19, 1
      %p121 = scmp.ne.s32.totalorder %s116, %s118
      %p122 = scmp.eq.s32.totalorder %s19, 0
      %p123 = por %p121, %p122
      %p124 = scmp.ne.s32.totalorder %s116, %s118
      %p125 = scmp.eq.s32.totalorder %s24, 1
      %p126 = por %p124, %p125
      %p127 = scmp.ne.s32.totalorder %s118, %s119
      %p128 = scmp.eq.s32.totalorder %s24, 0
      %p129 = por %p127, %p128
      %p130 = scmp.ne.s32.totalorder %s118, %s119
      %p131 = scmp.eq.s32.totalorder %s25, 1
      %p132 = por %p130, %p131
      %p134 = scmp.ne.s32.totalorder %s119, %s133
      %p135 = scmp.eq.s32.totalorder %s25, 0
      %p136 = por %p134, %p135
      %s137 = ssub.s32 %s19, %s26
      %p138 = scmp.eq.s32.totalorder %s137, 0
      %s140 = sadd.s32 %s139, 1
      %s141 = scalar_select %p138, %s139, %s140
      %p144 = pneg %p138
      %p145 = scmp.eq.s32.totalorder %s19, 1
      %p146 = por %p144, %p145
      %p147 = scmp.ne.s32.totalorder %s139, %s142
      %p148 = scmp.eq.s32.totalorder %s19, 0
      %p149 = por %p147, %p148
      %p150 = scmp.ne.s32.totalorder %s139, %s142
      %p151 = scmp.eq.s32.totalorder %s24, 1
      %p152 = por %p150, %p151
      %p153 = scmp.ne.s32.totalorder %s142, %s143
      %p154 = scmp.eq.s32.totalorder %s24, 0
      %p155 = por %p153, %p154
      %p156 = scmp.ne.s32.totalorder %s142, %s143
      %p157 = scmp.eq.s32.totalorder %s25, 1
      %p158 = por %p156, %p157
      %p160 = scmp.ne.s32.totalorder %s143, %s159
      %p161 = scmp.eq.s32.totalorder %s25, 0
      %p162 = por %p160, %p161
      %p163 = scmp.le.s32.totalorder 1, %s19
      %p164 = scmp.lt.s32.totalorder %s19, 3
      %p165 = pnand %p163, %p164
      %p166 = pneg %p165
      // Predicated region
      $region9: #{attention_module.1} parent=5 // pred_check
        _
      $region10: #{attention_module.1} parent=5 // pred_check_branch
        %168 = sbr.rel (%p165) target = $region12
      $region11: #{attention_module.1} parent=5 // pred_region
        %s169 = ssub.s32 %s19, 1
        // Predicated region
        $region13: #{attention_module.1} parent=11 // pred_check
          %p170 = pneg %p66
        $region14: #{attention_module.1} parent=11 // pred_check_branch
          %172 = sbr.rel (%p170) target = $region16
        $region15: #{attention_module.1} parent=11 // pred_region
          _
        $region16: #{attention_module.1} parent=11 // pred_fallthru
          _
        // Predicated region
        $region17: #{attention_module.1} parent=11 // pred_check
          %p173 = pneg %p87
        $region18: #{attention_module.1} parent=11 // pred_check_branch
          %175 = sbr.rel (%p173) target = $region20
        $region19: #{attention_module.1} parent=11 // pred_region
          _
        $region20: #{attention_module.1} parent=11 // pred_fallthru
          _
        // Predicated region
        $region21: #{attention_module.1} parent=11 // pred_check
          %p176 = pneg %p108
        $region22: #{attention_module.1} parent=11 // pred_check_branch
          %178 = sbr.rel (%p176) target = $region24
        $region23: #{attention_module.1} parent=11 // pred_region
          _
        $region24: #{attention_module.1} parent=11 // pred_fallthru
          _
        // Predicated region
        $region25: #{attention_module.1} parent=11 // pred_check
          %p179 = pneg %p129
        $region26: #{attention_module.1} parent=11 // pred_check_branch
          %181 = sbr.rel (%p179) target = $region28
        $region27: #{attention_module.1} parent=11 // pred_region
          _
        $region28: #{attention_module.1} parent=11 // pred_fallthru
          _
      $region12: #{attention_module.1} parent=5 // pred_fallthru
        _
      %p182 = scmp.lt.s32.totalorder %s19, 2
      // Predicated region
      $region29: #{attention_module.1} parent=5 // pred_check
        %p183 = pneg %p182
      $region30: #{attention_module.1} parent=5 // pred_check_branch
        %185 = sbr.rel (%p183) target = $region32
      $region31: #{attention_module.1} parent=5 // pred_region
        // Predicated region
        $region33: #{attention_module.1} parent=31 // pred_check
          %p186 = pneg %p39
        $region34: #{attention_module.1} parent=31 // pred_check_branch
          %188 = sbr.rel (%p186) target = $region36
        $region35: #{attention_module.1} parent=31 // pred_region
          %s189 = sand.u32 %s29, 1
          %s190 = scalar_lea.sflag [#allocation4], %s189
          %s191 = sand.u32 %s29, 1
          %s192 = smul.addr %s191, 64
          %s193 = scalar_lea.vmem [#allocation3], %s192
          %s194 = smul.u32 8, %s19
          %s196 = ssub.s32 1024, 1024
          %197 = vsyncadd %s190, %s196
          %s198 = smul.addr %s194, 128
          %s199 = scalar_lea.hbm %s0, %s198
          %s200 = sshll.u32 %s193, 4
          %s201 = int_to_ptr.vmem [resolvable:$true] %s200
          %206 = dma.hbm_to_vmem [thread:$0]  %s199, 1024, %s201, %s190, 128, 128, 8
        $region36: #{attention_module.1} parent=31 // pred_fallthru
          _
      $region32: #{attention_module.1} parent=5 // pred_fallthru
        _
      %p207 = scmp.le.s32.totalorder 1, %s19
      %p208 = scmp.lt.s32.totalorder %s19, 3
      %p209 = pnand %p207, %p208
      %p210 = pneg %p209
      // Predicated region
      $region37: #{attention_module.1} parent=5 // pred_check
        _
      $region38: #{attention_module.1} parent=5 // pred_check_branch
        %212 = sbr.rel (%p209) target = $region40
      $region39: #{attention_module.1} parent=5 // pred_region
        %s213 = ssub.s32 %s19, 1
        %s214 = sand.u32 %s32, 1
        %s215 = scalar_lea.sflag [#allocation4], %s214
        %s216 = sand.u32 %s32, 1
        %s217 = smul.addr %s216, 64
        %s218 = scalar_lea.vmem [#allocation3], %s217
        // Predicated region
        $region41: #{attention_module.1} parent=39 // pred_check
          %p219 = pneg %p45
        $region42: #{attention_module.1} parent=39 // pred_check_branch
          %221 = sbr.rel (%p219) target = $region44
        $region43: #{attention_module.1} parent=39 // pred_region
          %222 = dma.done %s215, 1024
        $region44: #{attention_module.1} parent=39 // pred_fallthru
          _
        %s223 = sand.u32 %s32, 1
        %s224 = scalar_lea.sflag [#allocation4], %s223
        %s225 = sand.u32 %s32, 1
        %s226 = smul.addr %s225, 64
        %s227 = scalar_lea.vmem [#allocation3], %s226
        %p228 = pneg %p45
        %p229 = pneg %p42
        %p230 = pneg %p66
        %p231 = pneg %p63
        %p232 = pneg %p87
        %p233 = pneg %p84
        %p234 = pneg %p108
        %p235 = pneg %p105
        %p236 = pneg %p129
        %p237 = pneg %p126
        %p238 = pneg %p155
        %p239 = pneg %p152
        %s240 = sand.u32 %s142, 1
        %s241 = scalar_lea.sflag [#allocation5], %s240
        %s242 = sand.u32 %s142, 1
        %s243 = smul.addr %s242, 8
        %s244 = scalar_lea.vmem [#allocation6], %s243
        %s245 = smul.u32 8, %s24
        %v246 = vld [vmem:[%s218] sm:$0xff]
        %v247 = vld [vmem:[%s218 + $0x8] sm:$0xff]
        %v248 = vld [vmem:[%s218 + $0x10] sm:$0xff]
        %v249 = vld [vmem:[%s218 + $0x18] sm:$0xff]
        %v250 = vld [vmem:[%s218 + $0x20] sm:$0xff]
        %v251 = vld [vmem:[%s218 + $0x28] sm:$0xff]
        %v252 = vld [vmem:[%s218 + $0x30] sm:$0xff]
        %v253 = vld [vmem:[%s218 + $0x38] sm:$0xff]
        %v254 = vld [vmem:[%s1] sm:$0xff]
        %v255 = vld [vmem:[%s1 + $0x8] sm:$0xff]
        %v256 = vld [vmem:[%s2] sm:$0x1]
        %v258 = vlaneseq
        %v259 = vshrl.u32 %v258, 7
        %v260 = vsub.s32 0, %v259
        %v261 = vrot.slane %v256, %v260
        %vm263 = vcmask 130048
        %v265 = vsel %vm263, %v246, 0
        %v268 = vsel %vm263, %v247, 0
        %v271 = vsel %vm263, %v248, 0
        %v274 = vsel %vm263, %v249, 0
        %v277 = vsel %vm263, %v250, 0
        %v280 = vsel %vm263, %v251, 0
        %v283 = vsel %vm263, %v252, 0
        %v286 = vsel %vm263, %v253, 0
        %288 = vmatprep.subr.mxu0 0.0
        %289 = vmatpush1.msra.mxu0 %v254
        %290 = vmatprep.subr.mxu0 0.0
        %291 = vmatpush1.msra.mxu0 %v255
        %292 = vmatprep.subr.mxu0 0.0
        %293 = vmatpush1.msra.mxu0 0.0
        %294 = vmatprep.subr.mxu0 0.0
        %295 = vmatpush1.msra.mxu0 0.0
        %296 = vmatprep.subr.mxu0 0.0
        %297 = vmatpush1.msra.mxu0 0.0
        %298 = vmatprep.subr.mxu0 0.0
        %299 = vmatpush1.msra.mxu0 0.0
        %300 = vmatprep.subr.mxu0 0.0
        %301 = vmatpush1.msra.mxu0 0.0
        %302 = vmatprep.subr.mxu0 0.0
        %303 = vmatpush1.msra.mxu0 0.0
        %304 = vmatprep.subr.mxu0 0.0
        %305 = vmatpush1.msra.mxu0 0.0
        %306 = vmatprep.subr.mxu0 0.0
        %307 = vmatpush1.msra.mxu0 0.0
        %308 = vmatprep.subr.mxu0 0.0
        %309 = vmatpush1.msra.mxu0 0.0
        %310 = vmatprep.subr.mxu0 0.0
        %311 = vmatpush1.msra.mxu0 0.0
        %312 = vmatprep.subr.mxu0 0.0
        %313 = vmatpush1.msra.mxu0 0.0
        %314 = vmatprep.subr.mxu0 0.0
        %315 = vmatpush1.msra.mxu0 0.0
        %316 = vmatprep.subr.mxu0 0.0
        %317 = vmatpush1.msra.mxu0 0.0
        %318 = vmatprep.subr.mxu0 0.0
        %319 = vmatpush1.msra.mxu0 0.0
        %320 = vmatprep.subr.mxu0 0.0
        %321 = vmatpush1.msra.mxu0 0.0
        %322 = vmatprep.subr.mxu0 0.0
        %323 = vmatpush1.msra.mxu0 0.0
        %324 = vmatprep.subr.mxu0 0.0
        %325 = vmatpush1.msra.mxu0 0.0
        %326 = vmatprep.subr.mxu0 0.0
        %327 = vmatpush1.msra.mxu0 0.0
        %328 = vmatprep.subr.mxu0 0.0
        %329 = vmatpush1.msra.mxu0 0.0
        %330 = vmatprep.subr.mxu0 0.0
        %331 = vmatpush1.msra.mxu0 0.0
        %332 = vmatprep.subr.mxu0 0.0
        %333 = vmatpush1.msra.mxu0 0.0
        %334 = vmatprep.subr.mxu0 0.0
        %335 = vmatpush1.msra.mxu0 0.0
        %336 = vmatprep.subr.mxu0 0.0
        %337 = vmatpush1.msra.mxu0 0.0
        %338 = vmatprep.subr.mxu0 0.0
        %339 = vmatpush1.msra.mxu0 0.0
        %340 = vmatprep.subr.mxu0 0.0
        %341 = vmatpush1.msra.mxu0 0.0
        %342 = vmatprep.subr.mxu0 0.0
        %343 = vmatpush1.msra.mxu0 0.0
        %344 = vmatprep.subr.mxu0 0.0
        %345 = vmatpush1.msra.mxu0 0.0
        %346 = vmatprep.subr.mxu0 0.0
        %347 = vmatpush1.msra.mxu0 0.0
        %348 = vmatprep.subr.mxu0 0.0
        %349 = vmatpush1.msra.mxu0 0.0
        %350 = vmatprep.subr.mxu0 0.0
        %351 = vmatpush1.msra.mxu0 0.0
        %352 = vmatprep.mubr.f32.mxu0 0.0
        %353 = vmatmul.mubr.f32.gmra.mrb[0].mxu0 %v265
        %v354 = vpop.f32.mrb[0].mxu0
        %v355 = vadd.f32 %v261, %v354
        %v356 = vpop.f32.mrb[0].mxu0
        %357 = vmatprep.mubr.f32.mxu0 0.0
        %358 = vmatmul.mubr.f32.gmra.mrb[0].mxu0 %v268
        %v359 = vpop.f32.mrb[0].mxu0
        %v360 = vadd.f32 %v261, %v359
        %v361 = vpop.f32.mrb[0].mxu0
        %362 = vmatprep.mubr.f32.mxu0 0.0
        %363 = vmatmul.mubr.f32.gmra.mrb[0].mxu0 %v271
        %v364 = vpop.f32.mrb[0].mxu0
        %v365 = vadd.f32 %v261, %v364
        %v366 = vpop.f32.mrb[0].mxu0
        %367 = vmatprep.mubr.f32.mxu0 0.0
        %368 = vmatmul.mubr.f32.gmra.mrb[0].mxu0 %v274
        %v369 = vpop.f32.mrb[0].mxu0
        %v370 = vadd.f32 %v261, %v369
        %v371 = vpop.f32.mrb[0].mxu0
        %372 = vmatprep.mubr.f32.mxu0 0.0
        %373 = vmatmul.mubr.f32.gmra.mrb[0].mxu0 %v277
        %v374 = vpop.f32.mrb[0].mxu0
        %v375 = vadd.f32 %v261, %v374
        %v376 = vpop.f32.mrb[0].mxu0
        %377 = vmatprep.mubr.f32.mxu0 0.0
        %378 = vmatmul.mubr.f32.gmra.mrb[0].mxu0 %v280
        %v379 = vpop.f32.mrb[0].mxu0
        %v380 = vadd.f32 %v261, %v379
        %v381 = vpop.f32.mrb[0].mxu0
        %382 = vmatprep.mubr.f32.mxu0 0.0
        %383 = vmatmul.mubr.f32.gmra.mrb[0].mxu0 %v283
        %v384 = vpop.f32.mrb[0].mxu0
        %v385 = vadd.f32 %v261, %v384
        %v386 = vpop.f32.mrb[0].mxu0
        %387 = vmatprep.mubr.f32.mxu0 0.0
        %388 = vmatmul.mubr.f32.gmra.mrb[0].mxu0 %v286
        %v389 = vpop.f32.mrb[0].mxu0
        %v390 = vadd.f32 %v261, %v389
        %v391 = vpop.f32.mrb[0].mxu0
        %392 = vdwg.mxu0
        %v393 = vtanh.pop %v355
        %v394 = vtanh.pop %v360
        %v395 = vtanh.pop %v365
        %v396 = vtanh.pop %v370
        %v397 = vtanh.pop %v375
        %v398 = vtanh.pop %v380
        %v399 = vtanh.pop %v385
        %v400 = vtanh.pop %v390
        %v401 = vld [vmem:[%s3] sm:$0x1]
        %v403 = vlaneseq
        %v404 = vshrl.u32 %v403, 7
        %v405 = vsub.s32 0, %v404
        %v406 = vrot.slane %v401, %v405
        %v408 = vmul.f32 %v393, %v406
        %v409 = vmul.f32 %v394, %v406
        %v410 = vmul.f32 %v395, %v406
        %v411 = vmul.f32 %v396, %v406
        %v412 = vmul.f32 %v397, %v406
        %v413 = vmul.f32 %v398, %v406
        %v414 = vmul.f32 %v399, %v406
        %v415 = vmul.f32 %v400, %v406
        %vm416 = vcmask 261120
        %v417 = vsel %vm416, %v408, 0.0
        %418 = vadd.xlane.f32.xlu0 %v417
        %v419 = vpop.xlane.xlu0 %418
        %v420 = vsel %vm416, %v409, 0.0
        %421 = vadd.xlane.f32.xlu0 %v420
        %v422 = vpop.xlane.xlu0 %421
        %v423 = vsel %vm416, %v410, 0.0
        %424 = vadd.xlane.f32.xlu0 %v423
        %v425 = vpop.xlane.xlu0 %424
        %v426 = vsel %vm416, %v411, 0.0
        %427 = vadd.xlane.f32.xlu0 %v426
        %v428 = vpop.xlane.xlu0 %427
        %v429 = vsel %vm416, %v412, 0.0
        %430 = vadd.xlane.f32.xlu0 %v429
        %v431 = vpop.xlane.xlu0 %430
        %v432 = vsel %vm416, %v413, 0.0
        %433 = vadd.xlane.f32.xlu0 %v432
        %v434 = vpop.xlane.xlu0 %433
        %v435 = vsel %vm416, %v414, 0.0
        %436 = vadd.xlane.f32.xlu0 %v435
        %v437 = vpop.xlane.xlu0 %436
        %v438 = vsel %vm416, %v415, 0.0
        %439 = vadd.xlane.f32.xlu0 %v438
        %v440 = vpop.xlane.xlu0 %439
        %v441 = vld [vmem:[#allocation2] sm:$0x1]
        %v443 = vlaneseq
        %v444 = vshrl.u32 %v443, 7
        %v445 = vsub.s32 0, %v444
        %v446 = vrot.slane %v441, %v445
        %447 = vset.pattern.permute.xlu0 0
        %448 = vperm.xlu0 %447, %v446
        %v449 = vpop.permute.xlu0 %448
        %v451 = vadd.f32 %v419, %v449
        %v452 = vadd.f32 %v422, %v449
        %v453 = vadd.f32 %v425, %v449
        %v454 = vadd.f32 %v428, %v449
        %v455 = vadd.f32 %v431, %v449
        %v456 = vadd.f32 %v434, %v449
        %v457 = vadd.f32 %v437, %v449
        %v458 = vadd.f32 %v440, %v449
        %v467 = vlaneseq
        %v468 = vand.u32 %v467, 127
        %v469 = vlaneseq
        %v470 = vshrl.u32 %v469, 7
        %v471 = vsub.s32 %v468, %v470
        %v472 = vrot.slane %v451, %v471
        %v473 = vlaneseq
        %v474 = vshrl.u32 %v473, 7
        %v475 = vsub.s32 %v468, %v474
        %v476 = vrot.slane %v452, %v475
        %v477 = vlaneseq
        %v478 = vshrl.u32 %v477, 7
        %v479 = vsub.s32 %v468, %v478
        %v480 = vrot.slane %v453, %v479
        %v481 = vlaneseq
        %v482 = vshrl.u32 %v481, 7
        %v483 = vsub.s32 %v468, %v482
        %v484 = vrot.slane %v454, %v483
        %v485 = vlaneseq
        %v486 = vshrl.u32 %v485, 7
        %v487 = vsub.s32 %v468, %v486
        %v488 = vrot.slane %v455, %v487
        %v489 = vlaneseq
        %v490 = vshrl.u32 %v489, 7
        %v491 = vsub.s32 %v468, %v490
        %v492 = vrot.slane %v456, %v491
        %v493 = vlaneseq
        %v494 = vshrl.u32 %v493, 7
        %v495 = vsub.s32 %v468, %v494
        %v496 = vrot.slane %v457, %v495
        %v497 = vlaneseq
        %v498 = vshrl.u32 %v497, 7
        %v499 = vsub.s32 %v468, %v498
        %v500 = vrot.slane %v458, %v499
        %vm501 = vcmask 1041409
        %v502 = vsel %vm501, %v476, %v472
        %vm503 = vcmask 1042434
        %v504 = vsel %vm503, %v480, %v502
        %vm505 = vcmask 1043459
        %v506 = vsel %vm505, %v484, %v504
        %vm507 = vcmask 1044484
        %v508 = vsel %vm507, %v488, %v506
        %vm509 = vcmask 1045509
        %v510 = vsel %vm509, %v492, %v508
        %vm511 = vcmask 1046534
        %v512 = vsel %vm511, %v496, %v510
        %vm513 = vcmask 1047559
        %v514 = vsel %vm513, %v500, %v512
        %vm516 = vcmask 64512
        %v517 = vsel %vm516, %v514, -inf
        %518 = vmax.xlane.f32.xlu0 %v517
        %v519 = vpop.xlane.xlu0 %518
        %v521 = vlaneseq
        %v522 = vshrl.u32 %v521, 7
        %v523 = vsub.s32 0, %v522
        %v524 = vrot.slane %v519, %v523
        %v525 = vlaneseq
        %v526 = vshrl.u32 %v525, 7
        %v527 = vsub.s32 1, %v526
        %v528 = vrot.slane %v519, %v527
        %v529 = vlaneseq
        %v530 = vshrl.u32 %v529, 7
        %v531 = vsub.s32 2, %v530
        %v532 = vrot.slane %v519, %v531
        %v533 = vlaneseq
        %v534 = vshrl.u32 %v533, 7
        %v535 = vsub.s32 3, %v534
        %v536 = vrot.slane %v519, %v535
        %v537 = vlaneseq
        %v538 = vshrl.u32 %v537, 7
        %v539 = vsub.s32 4, %v538
        %v540 = vrot.slane %v519, %v539
        %v541 = vlaneseq
        %v542 = vshrl.u32 %v541, 7
        %v543 = vsub.s32 5, %v542
        %v544 = vrot.slane %v519, %v543
        %v545 = vlaneseq
        %v546 = vshrl.u32 %v545, 7
        %v547 = vsub.s32 6, %v546
        %v548 = vrot.slane %v519, %v547
        %v549 = vlaneseq
        %v550 = vshrl.u32 %v549, 7
        %v551 = vsub.s32 7, %v550
        %v552 = vrot.slane %v519, %v551
        %v561 = vsub.f32 %v451, %v524
        %v562 = vsub.f32 %v452, %v528
        %v563 = vsub.f32 %v453, %v532
        %v564 = vsub.f32 %v454, %v536
        %v565 = vsub.f32 %v455, %v540
        %v566 = vsub.f32 %v456, %v544
        %v567 = vsub.f32 %v457, %v548
        %v568 = vsub.f32 %v458, %v552
        %v569 = vmul.f32 %v561, 1.442695
        %v570 = vpow.pop %v569
        %v571 = vmul.f32 %v562, 1.442695
        %v572 = vpow.pop %v571
        %v573 = vmul.f32 %v563, 1.442695
        %v574 = vpow.pop %v573
        %v575 = vmul.f32 %v564, 1.442695
        %v576 = vpow.pop %v575
        %v577 = vmul.f32 %v565, 1.442695
        %v578 = vpow.pop %v577
        %v579 = vmul.f32 %v566, 1.442695
        %v580 = vpow.pop %v579
        %v581 = vmul.f32 %v567, 1.442695
        %v582 = vpow.pop %v581
        %v583 = vmul.f32 %v568, 1.442695
        %v584 = vpow.pop %v583
        %593 = vset.pattern.permute.xlu0 0
        %594 = vperm.xlu0 %593, %v570
        %v595 = vpop.permute.xlu0 %594
        %596 = vset.pattern.permute.xlu0 0
        %597 = vperm.xlu0 %596, %v572
        %v598 = vpop.permute.xlu0 %597
        %599 = vset.pattern.permute.xlu0 0
        %600 = vperm.xlu0 %599, %v574
        %v601 = vpop.permute.xlu0 %600
        %602 = vset.pattern.permute.xlu0 0
        %603 = vperm.xlu0 %602, %v576
        %v604 = vpop.permute.xlu0 %603
        %605 = vset.pattern.permute.xlu0 0
        %606 = vperm.xlu0 %605, %v578
        %v607 = vpop.permute.xlu0 %606
        %608 = vset.pattern.permute.xlu0 0
        %609 = vperm.xlu0 %608, %v580
        %v610 = vpop.permute.xlu0 %609
        %611 = vset.pattern.permute.xlu0 0
        %612 = vperm.xlu0 %611, %v582
        %v613 = vpop.permute.xlu0 %612
        %614 = vset.pattern.permute.xlu0 0
        %615 = vperm.xlu0 %614, %v584
        %v616 = vpop.permute.xlu0 %615
        %v617 = vlaneseq
        %v618 = vshrl.u32 %v617, 7
        %v619 = vsub.s32 %v468, %v618
        %v620 = vrot.slane %v595, %v619
        %v621 = vlaneseq
        %v622 = vshrl.u32 %v621, 7
        %v623 = vsub.s32 %v468, %v622
        %v624 = vrot.slane %v598, %v623
        %v625 = vlaneseq
        %v626 = vshrl.u32 %v625, 7
        %v627 = vsub.s32 %v468, %v626
        %v628 = vrot.slane %v601, %v627
        %v629 = vlaneseq
        %v630 = vshrl.u32 %v629, 7
        %v631 = vsub.s32 %v468, %v630
        %v632 = vrot.slane %v604, %v631
        %v633 = vlaneseq
        %v634 = vshrl.u32 %v633, 7
        %v635 = vsub.s32 %v468, %v634
        %v636 = vrot.slane %v607, %v635
        %v637 = vlaneseq
        %v638 = vshrl.u32 %v637, 7
        %v639 = vsub.s32 %v468, %v638
        %v640 = vrot.slane %v610, %v639
        %v641 = vlaneseq
        %v642 = vshrl.u32 %v641, 7
        %v643 = vsub.s32 %v468, %v642
        %v644 = vrot.slane %v613, %v643
        %v645 = vlaneseq
        %v646 = vshrl.u32 %v645, 7
        %v647 = vsub.s32 %v468, %v646
        %v648 = vrot.slane %v616, %v647
        %v649 = vsel %vm501, %v624, %v620
        %v650 = vsel %vm503, %v628, %v649
        %v651 = vsel %vm505, %v632, %v650
        %v652 = vsel %vm507, %v636, %v651
        %v653 = vsel %vm509, %v640, %v652
        %v654 = vsel %vm511, %v644, %v653
        %v655 = vsel %vm513, %v648, %v654
        %v657 = vsel %vm516, %v655, 0.0
        %658 = vadd.xlane.f32.xlu0 %v657
        %v659 = vpop.xlane.xlu0 %658
        %v660 = vsel %vm516, %v620, 0
        %662 = vmatprep.subr.mxu0 0.0
        %663 = vmatpush1.msra.mxu0 %v246
        %664 = vmatprep.subr.mxu0 0.0
        %665 = vmatpush1.msra.mxu0 0.0
        %666 = vmatprep.subr.mxu0 0.0
        %667 = vmatpush1.msra.mxu0 0.0
        %668 = vmatprep.subr.mxu0 0.0
        %669 = vmatpush1.msra.mxu0 0.0
        %670 = vmatprep.subr.mxu0 0.0
        %671 = vmatpush1.msra.mxu0 0.0
        %672 = vmatprep.subr.mxu0 0.0
        %673 = vmatpush1.msra.mxu0 0.0
        %674 = vmatprep.subr.mxu0 0.0
        %675 = vmatpush1.msra.mxu0 0.0
        %676 = vmatprep.subr.mxu0 0.0
        %677 = vmatpush1.msra.mxu0 0.0
        %678 = vmatprep.subr.mxu0 0.0
        %679 = vmatpush1.msra.mxu0 0.0
        %680 = vmatprep.subr.mxu0 0.0
        %681 = vmatpush1.msra.mxu0 0.0
        %682 = vmatprep.subr.mxu0 0.0
        %683 = vmatpush1.msra.mxu0 0.0
        %684 = vmatprep.subr.mxu0 0.0
        %685 = vmatpush1.msra.mxu0 0.0
        %686 = vmatprep.subr.mxu0 0.0
        %687 = vmatpush1.msra.mxu0 0.0
        %688 = vmatprep.subr.mxu0 0.0
        %689 = vmatpush1.msra.mxu0 0.0
        %690 = vmatprep.subr.mxu0 0.0
        %691 = vmatpush1.msra.mxu0 0.0
        %692 = vmatprep.subr.mxu0 0.0
        %693 = vmatpush1.msra.mxu0 0.0
        %694 = vmatprep.subr.mxu0 0.0
        %695 = vmatpush1.msra.mxu0 0.0
        %696 = vmatprep.subr.mxu0 0.0
        %697 = vmatpush1.msra.mxu0 0.0
        %698 = vmatprep.subr.mxu0 0.0
        %699 = vmatpush1.msra.mxu0 0.0
        %700 = vmatprep.subr.mxu0 0.0
        %701 = vmatpush1.msra.mxu0 0.0
        %702 = vmatprep.subr.mxu0 0.0
        %703 = vmatpush1.msra.mxu0 0.0
        %704 = vmatprep.subr.mxu0 0.0
        %705 = vmatpush1.msra.mxu0 0.0
        %706 = vmatprep.subr.mxu0 0.0
        %707 = vmatpush1.msra.mxu0 0.0
        %708 = vmatprep.subr.mxu0 0.0
        %709 = vmatpush1.msra.mxu0 0.0
        %710 = vmatprep.subr.mxu0 0.0
        %711 = vmatpush1.msra.mxu0 0.0
        %712 = vmatprep.subr.mxu0 0.0
        %713 = vmatpush1.msra.mxu0 0.0
        %714 = vmatprep.subr.mxu0 0.0
        %715 = vmatpush1.msra.mxu0 0.0
        %716 = vmatprep.subr.mxu0 0.0
        %717 = vmatpush1.msra.mxu0 0.0
        %718 = vmatprep.subr.mxu0 0.0
        %719 = vmatpush1.msra.mxu0 0.0
        %720 = vmatprep.subr.mxu0 0.0
        %721 = vmatpush1.msra.mxu0 0.0
        %722 = vmatprep.subr.mxu0 0.0
        %723 = vmatpush1.msra.mxu0 0.0
        %724 = vmatprep.subr.mxu0 0.0
        %725 = vmatpush1.msra.mxu0 0.0
        %726 = vmatprep.mubr.f32.mxu0 0.0
        %727 = vmatmul.mubr.f32.gmra.mrb[0].mxu0 %v660
        %v728 = vpop.f32.mrb[0].mxu0
        %v729 = vadd.f32 0.0, %v728
        %v730 = vpop.f32.mrb[0].mxu0
        %731 = vdwg.mxu0
        %v732 = vsel %vm516, %v624, 0
        %734 = vmatprep.subr.mxu0 0.0
        %735 = vmatpush1.msra.mxu0 %v247
        %736 = vmatprep.subr.mxu0 0.0
        %737 = vmatpush1.msra.mxu0 0.0
        %738 = vmatprep.subr.mxu0 0.0
        %739 = vmatpush1.msra.mxu0 0.0
        %740 = vmatprep.subr.mxu0 0.0
        %741 = vmatpush1.msra.mxu0 0.0
        %742 = vmatprep.subr.mxu0 0.0
        %743 = vmatpush1.msra.mxu0 0.0
        %744 = vmatprep.subr.mxu0 0.0
        %745 = vmatpush1.msra.mxu0 0.0
        %746 = vmatprep.subr.mxu0 0.0
        %747 = vmatpush1.msra.mxu0 0.0
        %748 = vmatprep.subr.mxu0 0.0
        %749 = vmatpush1.msra.mxu0 0.0
        %750 = vmatprep.subr.mxu0 0.0
        %751 = vmatpush1.msra.mxu0 0.0
        %752 = vmatprep.subr.mxu0 0.0
        %753 = vmatpush1.msra.mxu0 0.0
        %754 = vmatprep.subr.mxu0 0.0
        %755 = vmatpush1.msra.mxu0 0.0
        %756 = vmatprep.subr.mxu0 0.0
        %757 = vmatpush1.msra.mxu0 0.0
        %758 = vmatprep.subr.mxu0 0.0
        %759 = vmatpush1.msra.mxu0 0.0
        %760 = vmatprep.subr.mxu0 0.0
        %761 = vmatpush1.msra.mxu0 0.0
        %762 = vmatprep.subr.mxu0 0.0
        %763 = vmatpush1.msra.mxu0 0.0
        %764 = vmatprep.subr.mxu0 0.0
        %765 = vmatpush1.msra.mxu0 0.0
        %766 = vmatprep.subr.mxu0 0.0
        %767 = vmatpush1.msra.mxu0 0.0
        %768 = vmatprep.subr.mxu0 0.0
        %769 = vmatpush1.msra.mxu0 0.0
        %770 = vmatprep.subr.mxu0 0.0
        %771 = vmatpush1.msra.mxu0 0.0
        %772 = vmatprep.subr.mxu0 0.0
        %773 = vmatpush1.msra.mxu0 0.0
        %774 = vmatprep.subr.mxu0 0.0
        %775 = vmatpush1.msra.mxu0 0.0
        %776 = vmatprep.subr.mxu0 0.0
        %777 = vmatpush1.msra.mxu0 0.0
        %778 = vmatprep.subr.mxu0 0.0
        %779 = vmatpush1.msra.mxu0 0.0
        %780 = vmatprep.subr.mxu0 0.0
        %781 = vmatpush1.msra.mxu0 0.0
        %782 = vmatprep.subr.mxu0 0.0
        %783 = vmatpush1.msra.mxu0 0.0
        %784 = vmatprep.subr.mxu0 0.0
        %785 = vmatpush1.msra.mxu0 0.0
        %786 = vmatprep.subr.mxu0 0.0
        %787 = vmatpush1.msra.mxu0 0.0
        %788 = vmatprep.subr.mxu0 0.0
        %789 = vmatpush1.msra.mxu0 0.0
        %790 = vmatprep.subr.mxu0 0.0
        %791 = vmatpush1.msra.mxu0 0.0
        %792 = vmatprep.subr.mxu0 0.0
        %793 = vmatpush1.msra.mxu0 0.0
        %794 = vmatprep.subr.mxu0 0.0
        %795 = vmatpush1.msra.mxu0 0.0
        %796 = vmatprep.subr.mxu0 0.0
        %797 = vmatpush1.msra.mxu0 0.0
        %798 = vmatprep.mubr.f32.mxu0 0.0
        %799 = vmatmul.mubr.f32.gmra.mrb[0].mxu0 %v732
        %v800 = vpop.f32.mrb[0].mxu0
        %v801 = vadd.f32 0.0, %v800
        %v802 = vpop.f32.mrb[0].mxu0
        %803 = vdwg.mxu0
        %v804 = vsel %vm516, %v628, 0
        %806 = vmatprep.subr.mxu0 0.0
        %807 = vmatpush1.msra.mxu0 %v248
        %808 = vmatprep.subr.mxu0 0.0
        %809 = vmatpush1.msra.mxu0 0.0
        %810 = vmatprep.subr.mxu0 0.0
        %811 = vmatpush1.msra.mxu0 0.0
        %812 = vmatprep.subr.mxu0 0.0
        %813 = vmatpush1.msra.mxu0 0.0
        %814 = vmatprep.subr.mxu0 0.0
        %815 = vmatpush1.msra.mxu0 0.0
        %816 = vmatprep.subr.mxu0 0.0
        %817 = vmatpush1.msra.mxu0 0.0
        %818 = vmatprep.subr.mxu0 0.0
        %819 = vmatpush1.msra.mxu0 0.0
        %820 = vmatprep.subr.mxu0 0.0
        %821 = vmatpush1.msra.mxu0 0.0
        %822 = vmatprep.subr.mxu0 0.0
        %823 = vmatpush1.msra.mxu0 0.0
        %824 = vmatprep.subr.mxu0 0.0
        %825 = vmatpush1.msra.mxu0 0.0
        %826 = vmatprep.subr.mxu0 0.0
        %827 = vmatpush1.msra.mxu0 0.0
        %828 = vmatprep.subr.mxu0 0.0
        %829 = vmatpush1.msra.mxu0 0.0
        %830 = vmatprep.subr.mxu0 0.0
        %831 = vmatpush1.msra.mxu0 0.0
        %832 = vmatprep.subr.mxu0 0.0
        %833 = vmatpush1.msra.mxu0 0.0
        %834 = vmatprep.subr.mxu0 0.0
        %835 = vmatpush1.msra.mxu0 0.0
        %836 = vmatprep.subr.mxu0 0.0
        %837 = vmatpush1.msra.mxu0 0.0
        %838 = vmatprep.subr.mxu0 0.0
        %839 = vmatpush1.msra.mxu0 0.0
        %840 = vmatprep.subr.mxu0 0.0
        %841 = vmatpush1.msra.mxu0 0.0
        %842 = vmatprep.subr.mxu0 0.0
        %843 = vmatpush1.msra.mxu0 0.0
        %844 = vmatprep.subr.mxu0 0.0
        %845 = vmatpush1.msra.mxu0 0.0
        %846 = vmatprep.subr.mxu0 0.0
        %847 = vmatpush1.msra.mxu0 0.0
        %848 = vmatprep.subr.mxu0 0.0
        %849 = vmatpush1.msra.mxu0 0.0
        %850 = vmatprep.subr.mxu0 0.0
        %851 = vmatpush1.msra.mxu0 0.0
        %852 = vmatprep.subr.mxu0 0.0
        %853 = vmatpush1.msra.mxu0 0.0
        %854 = vmatprep.subr.mxu0 0.0
        %855 = vmatpush1.msra.mxu0 0.0
        %856 = vmatprep.subr.mxu0 0.0
        %857 = vmatpush1.msra.mxu0 0.0
        %858 = vmatprep.subr.mxu0 0.0
        %859 = vmatpush1.msra.mxu0 0.0
        %860 = vmatprep.subr.mxu0 0.0
        %861 = vmatpush1.msra.mxu0 0.0
        %862 = vmatprep.subr.mxu0 0.0
        %863 = vmatpush1.msra.mxu0 0.0
        %864 = vmatprep.subr.mxu0 0.0
        %865 = vmatpush1.msra.mxu0 0.0
        %866 = vmatprep.subr.mxu0 0.0
        %867 = vmatpush1.msra.mxu0 0.0
        %868 = vmatprep.subr.mxu0 0.0
        %869 = vmatpush1.msra.mxu0 0.0
        %870 = vmatprep.mubr.f32.mxu0 0.0
        %871 = vmatmul.mubr.f32.gmra.mrb[0].mxu0 %v804
        %v872 = vpop.f32.mrb[0].mxu0
        %v873 = vadd.f32 0.0, %v872
        %v874 = vpop.f32.mrb[0].mxu0
        %875 = vdwg.mxu0
        %v876 = vsel %vm516, %v632, 0
        %878 = vmatprep.subr.mxu0 0.0
        %879 = vmatpush1.msra.mxu0 %v249
        %880 = vmatprep.subr.mxu0 0.0
        %881 = vmatpush1.msra.mxu0 0.0
        %882 = vmatprep.subr.mxu0 0.0
        %883 = vmatpush1.msra.mxu0 0.0
        %884 = vmatprep.subr.mxu0 0.0
        %885 = vmatpush1.msra.mxu0 0.0
        %886 = vmatprep.subr.mxu0 0.0
        %887 = vmatpush1.msra.mxu0 0.0
        %888 = vmatprep.subr.mxu0 0.0
        %889 = vmatpush1.msra.mxu0 0.0
        %890 = vmatprep.subr.mxu0 0.0
        %891 = vmatpush1.msra.mxu0 0.0
        %892 = vmatprep.subr.mxu0 0.0
        %893 = vmatpush1.msra.mxu0 0.0
        %894 = vmatprep.subr.mxu0 0.0
        %895 = vmatpush1.msra.mxu0 0.0
        %896 = vmatprep.subr.mxu0 0.0
        %897 = vmatpush1.msra.mxu0 0.0
        %898 = vmatprep.subr.mxu0 0.0
        %899 = vmatpush1.msra.mxu0 0.0
        %900 = vmatprep.subr.mxu0 0.0
        %901 = vmatpush1.msra.mxu0 0.0
        %902 = vmatprep.subr.mxu0 0.0
        %903 = vmatpush1.msra.mxu0 0.0
        %904 = vmatprep.subr.mxu0 0.0
        %905 = vmatpush1.msra.mxu0 0.0
        %906 = vmatprep.subr.mxu0 0.0
        %907 = vmatpush1.msra.mxu0 0.0
        %908 = vmatprep.subr.mxu0 0.0
        %909 = vmatpush1.msra.mxu0 0.0
        %910 = vmatprep.subr.mxu0 0.0
        %911 = vmatpush1.msra.mxu0 0.0
        %912 = vmatprep.subr.mxu0 0.0
        %913 = vmatpush1.msra.mxu0 0.0
        %914 = vmatprep.subr.mxu0 0.0
        %915 = vmatpush1.msra.mxu0 0.0
        %916 = vmatprep.subr.mxu0 0.0
        %917 = vmatpush1.msra.mxu0 0.0
        %918 = vmatprep.subr.mxu0 0.0
        %919 = vmatpush1.msra.mxu0 0.0
        %920 = vmatprep.subr.mxu0 0.0
        %921 = vmatpush1.msra.mxu0 0.0
        %922 = vmatprep.subr.mxu0 0.0
        %923 = vmatpush1.msra.mxu0 0.0
        %924 = vmatprep.subr.mxu0 0.0
        %925 = vmatpush1.msra.mxu0 0.0
        %926 = vmatprep.subr.mxu0 0.0
        %927 = vmatpush1.msra.mxu0 0.0
        %928 = vmatprep.subr.mxu0 0.0
        %929 = vmatpush1.msra.mxu0 0.0
        %930 = vmatprep.subr.mxu0 0.0
        %931 = vmatpush1.msra.mxu0 0.0
        %932 = vmatprep.subr.mxu0 0.0
        %933 = vmatpush1.msra.mxu0 0.0
        %934 = vmatprep.subr.mxu0 0.0
        %935 = vmatpush1.msra.mxu0 0.0
        %936 = vmatprep.subr.mxu0 0.0
        %937 = vmatpush1.msra.mxu0 0.0
        %938 = vmatprep.subr.mxu0 0.0
        %939 = vmatpush1.msra.mxu0 0.0
        %940 = vmatprep.subr.mxu0 0.0
        %941 = vmatpush1.msra.mxu0 0.0
        %942 = vmatprep.mubr.f32.mxu0 0.0
        %943 = vmatmul.mubr.f32.gmra.mrb[0].mxu0 %v876
        %v944 = vpop.f32.mrb[0].mxu0
        %v945 = vadd.f32 0.0, %v944
        %v946 = vpop.f32.mrb[0].mxu0
        %947 = vdwg.mxu0
        %v948 = vsel %vm516, %v636, 0
        %950 = vmatprep.subr.mxu0 0.0
        %951 = vmatpush1.msra.mxu0 %v250
        %952 = vmatprep.subr.mxu0 0.0
        %953 = vmatpush1.msra.mxu0 0.0
        %954 = vmatprep.subr.mxu0 0.0
        %955 = vmatpush1.msra.mxu0 0.0
        %956 = vmatprep.subr.mxu0 0.0
        %957 = vmatpush1.msra.mxu0 0.0
        %958 = vmatprep.subr.mxu0 0.0
        %959 = vmatpush1.msra.mxu0 0.0
        %960 = vmatprep.subr.mxu0 0.0
        %961 = vmatpush1.msra.mxu0 0.0
        %962 = vmatprep.subr.mxu0 0.0
        %963 = vmatpush1.msra.mxu0 0.0
        %964 = vmatprep.subr.mxu0 0.0
        %965 = vmatpush1.msra.mxu0 0.0
        %966 = vmatprep.subr.mxu0 0.0
        %967 = vmatpush1.msra.mxu0 0.0
        %968 = vmatprep.subr.mxu0 0.0
        %969 = vmatpush1.msra.mxu0 0.0
        %970 = vmatprep.subr.mxu0 0.0
        %971 = vmatpush1.msra.mxu0 0.0
        %972 = vmatprep.subr.mxu0 0.0
        %973 = vmatpush1.msra.mxu0 0.0
        %974 = vmatprep.subr.mxu0 0.0
        %975 = vmatpush1.msra.mxu0 0.0
        %976 = vmatprep.subr.mxu0 0.0
        %977 = vmatpush1.msra.mxu0 0.0
        %978 = vmatprep.subr.mxu0 0.0
        %979 = vmatpush1.msra.mxu0 0.0
        %980 = vmatprep.subr.mxu0 0.0
        %981 = vmatpush1.msra.mxu0 0.0
        %982 = vmatprep.subr.mxu0 0.0
        %983 = vmatpush1.msra.mxu0 0.0
        %984 = vmatprep.subr.mxu0 0.0
        %985 = vmatpush1.msra.mxu0 0.0
        %986 = vmatprep.subr.mxu0 0.0
        %987 = vmatpush1.msra.mxu0 0.0
        %988 = vmatprep.subr.mxu0 0.0
        %989 = vmatpush1.msra.mxu0 0.0
        %990 = vmatprep.subr.mxu0 0.0
        %991 = vmatpush1.msra.mxu0 0.0
        %992 = vmatprep.subr.mxu0 0.0
        %993 = vmatpush1.msra.mxu0 0.0
        %994 = vmatprep.subr.mxu0 0.0
        %995 = vmatpush1.msra.mxu0 0.0
        %996 = vmatprep.subr.mxu0 0.0
        %997 = vmatpush1.msra.mxu0 0.0
        %998 = vmatprep.subr.mxu0 0.0
        %999 = vmatpush1.msra.mxu0 0.0
        %1000 = vmatprep.subr.mxu0 0.0
        %1001 = vmatpush1.msra.mxu0 0.0
        %1002 = vmatprep.subr.mxu0 0.0
        %1003 = vmatpush1.msra.mxu0 0.0
        %1004 = vmatprep.subr.mxu0 0.0
        %1005 = vmatpush1.msra.mxu0 0.0
        %1006 = vmatprep.subr.mxu0 0.0
        %1007 = vmatpush1.msra.mxu0 0.0
        %1008 = vmatprep.subr.mxu0 0.0
        %1009 = vmatpush1.msra.mxu0 0.0
        %1010 = vmatprep.subr.mxu0 0.0
        %1011 = vmatpush1.msra.mxu0 0.0
        %1012 = vmatprep.subr.mxu0 0.0
        %1013 = vmatpush1.msra.mxu0 0.0
        %1014 = vmatprep.mubr.f32.mxu0 0.0
        %1015 = vmatmul.mubr.f32.gmra.mrb[0].mxu0 %v948
        %v1016 = vpop.f32.mrb[0].mxu0
        %v1017 = vadd.f32 0.0, %v1016
        %v1018 = vpop.f32.mrb[0].mxu0
        %1019 = vdwg.mxu0
        %v1020 = vsel %vm516, %v640, 0
        %1022 = vmatprep.subr.mxu0 0.0
        %1023 = vmatpush1.msra.mxu0 %v251
        %1024 = vmatprep.subr.mxu0 0.0
        %1025 = vmatpush1.msra.mxu0 0.0
        %1026 = vmatprep.subr.mxu0 0.0
        %1027 = vmatpush1.msra.mxu0 0.0
        %1028 = vmatprep.subr.mxu0 0.0
        %1029 = vmatpush1.msra.mxu0 0.0
        %1030 = vmatprep.subr.mxu0 0.0
        %1031 = vmatpush1.msra.mxu0 0.0
        %1032 = vmatprep.subr.mxu0 0.0
        %1033 = vmatpush1.msra.mxu0 0.0
        %1034 = vmatprep.subr.mxu0 0.0
        %1035 = vmatpush1.msra.mxu0 0.0
        %1036 = vmatprep.subr.mxu0 0.0
        %1037 = vmatpush1.msra.mxu0 0.0
        %1038 = vmatprep.subr.mxu0 0.0
        %1039 = vmatpush1.msra.mxu0 0.0
        %1040 = vmatprep.subr.mxu0 0.0
        %1041 = vmatpush1.msra.mxu0 0.0
        %1042 = vmatprep.subr.mxu0 0.0
        %1043 = vmatpush1.msra.mxu0 0.0
        %1044 = vmatprep.subr.mxu0 0.0
        %1045 = vmatpush1.msra.mxu0 0.0
        %1046 = vmatprep.subr.mxu0 0.0
        %1047 = vmatpush1.msra.mxu0 0.0
        %1048 = vmatprep.subr.mxu0 0.0
        %1049 = vmatpush1.msra.mxu0 0.0
        %1050 = vmatprep.subr.mxu0 0.0
        %1051 = vmatpush1.msra.mxu0 0.0
        %1052 = vmatprep.subr.mxu0 0.0
        %1053 = vmatpush1.msra.mxu0 0.0
        %1054 = vmatprep.subr.mxu0 0.0
        %1055 = vmatpush1.msra.mxu0 0.0
        %1056 = vmatprep.subr.mxu0 0.0
        %1057 = vmatpush1.msra.mxu0 0.0
        %1058 = vmatprep.subr.mxu0 0.0
        %1059 = vmatpush1.msra.mxu0 0.0
        %1060 = vmatprep.subr.mxu0 0.0
        %1061 = vmatpush1.msra.mxu0 0.0
        %1062 = vmatprep.subr.mxu0 0.0
        %1063 = vmatpush1.msra.mxu0 0.0
        %1064 = vmatprep.subr.mxu0 0.0
        %1065 = vmatpush1.msra.mxu0 0.0
        %1066 = vmatprep.subr.mxu0 0.0
        %1067 = vmatpush1.msra.mxu0 0.0
        %1068 = vmatprep.subr.mxu0 0.0
        %1069 = vmatpush1.msra.mxu0 0.0
        %1070 = vmatprep.subr.mxu0 0.0
        %1071 = vmatpush1.msra.mxu0 0.0
        %1072 = vmatprep.subr.mxu0 0.0
        %1073 = vmatpush1.msra.mxu0 0.0
        %1074 = vmatprep.subr.mxu0 0.0
        %1075 = vmatpush1.msra.mxu0 0.0
        %1076 = vmatprep.subr.mxu0 0.0
        %1077 = vmatpush1.msra.mxu0 0.0
        %1078 = vmatprep.subr.mxu0 0.0
        %1079 = vmatpush1.msra.mxu0 0.0
        %1080 = vmatprep.subr.mxu0 0.0
        %1081 = vmatpush1.msra.mxu0 0.0
        %1082 = vmatprep.subr.mxu0 0.0
        %1083 = vmatpush1.msra.mxu0 0.0
        %1084 = vmatprep.subr.mxu0 0.0
        %1085 = vmatpush1.msra.mxu0 0.0
        %1086 = vmatprep.mubr.f32.mxu0 0.0
        %1087 = vmatmul.mubr.f32.gmra.mrb[0].mxu0 %v1020
        %v1088 = vpop.f32.mrb[0].mxu0
        %v1089 = vadd.f32 0.0, %v1088
        %v1090 = vpop.f32.mrb[0].mxu0
        %1091 = vdwg.mxu0
        %v1092 = vsel %vm516, %v644, 0
        %1094 = vmatprep.subr.mxu0 0.0
        %1095 = vmatpush1.msra.mxu0 %v252
        %1096 = vmatprep.subr.mxu0 0.0
        %1097 = vmatpush1.msra.mxu0 0.0
        %1098 = vmatprep.subr.mxu0 0.0
        %1099 = vmatpush1.msra.mxu0 0.0
        %1100 = vmatprep.subr.mxu0 0.0
        %1101 = vmatpush1.msra.mxu0 0.0
        %1102 = vmatprep.subr.mxu0 0.0
        %1103 = vmatpush1.msra.mxu0 0.0
        %1104 = vmatprep.subr.mxu0 0.0
        %1105 = vmatpush1.msra.mxu0 0.0
        %1106 = vmatprep.subr.mxu0 0.0
        %1107 = vmatpush1.msra.mxu0 0.0
        %1108 = vmatprep.subr.mxu0 0.0
        %1109 = vmatpush1.msra.mxu0 0.0
        %1110 = vmatprep.subr.mxu0 0.0
        %1111 = vmatpush1.msra.mxu0 0.0
        %1112 = vmatprep.subr.mxu0 0.0
        %1113 = vmatpush1.msra.mxu0 0.0
        %1114 = vmatprep.subr.mxu0 0.0
        %1115 = vmatpush1.msra.mxu0 0.0
        %1116 = vmatprep.subr.mxu0 0.0
        %1117 = vmatpush1.msra.mxu0 0.0
        %1118 = vmatprep.subr.mxu0 0.0
        %1119 = vmatpush1.msra.mxu0 0.0
        %1120 = vmatprep.subr.mxu0 0.0
        %1121 = vmatpush1.msra.mxu0 0.0
        %1122 = vmatprep.subr.mxu0 0.0
        %1123 = vmatpush1.msra.mxu0 0.0
        %1124 = vmatprep.subr.mxu0 0.0
        %1125 = vmatpush1.msra.mxu0 0.0
        %1126 = vmatprep.subr.mxu0 0.0
        %1127 = vmatpush1.msra.mxu0 0.0
        %1128 = vmatprep.subr.mxu0 0.0
        %1129 = vmatpush1.msra.mxu0 0.0
        %1130 = vmatprep.subr.mxu0 0.0
        %1131 = vmatpush1.msra.mxu0 0.0
        %1132 = vmatprep.subr.mxu0 0.0
        %1133 = vmatpush1.msra.mxu0 0.0
        %1134 = vmatprep.subr.mxu0 0.0
        %1135 = vmatpush1.msra.mxu0 0.0
        %1136 = vmatprep.subr.mxu0 0.0
        %1137 = vmatpush1.msra.mxu0 0.0
        %1138 = vmatprep.subr.mxu0 0.0
        %1139 = vmatpush1.msra.mxu0 0.0
        %1140 = vmatprep.subr.mxu0 0.0
        %1141 = vmatpush1.msra.mxu0 0.0
        %1142 = vmatprep.subr.mxu0 0.0
        %1143 = vmatpush1.msra.mxu0 0.0
        %1144 = vmatprep.subr.mxu0 0.0
        %1145 = vmatpush1.msra.mxu0 0.0
        %1146 = vmatprep.subr.mxu0 0.0
        %1147 = vmatpush1.msra.mxu0 0.0
        %1148 = vmatprep.subr.mxu0 0.0
        %1149 = vmatpush1.msra.mxu0 0.0
        %1150 = vmatprep.subr.mxu0 0.0
        %1151 = vmatpush1.msra.mxu0 0.0
        %1152 = vmatprep.subr.mxu0 0.0
        %1153 = vmatpush1.msra.mxu0 0.0
        %1154 = vmatprep.subr.mxu0 0.0
        %1155 = vmatpush1.msra.mxu0 0.0
        %1156 = vmatprep.subr.mxu0 0.0
        %1157 = vmatpush1.msra.mxu0 0.0
        %1158 = vmatprep.mubr.f32.mxu0 0.0
        %1159 = vmatmul.mubr.f32.gmra.mrb[0].mxu0 %v1092
        %v1160 = vpop.f32.mrb[0].mxu0
        %v1161 = vadd.f32 0.0, %v1160
        %v1162 = vpop.f32.mrb[0].mxu0
        %1163 = vdwg.mxu0
        %v1164 = vsel %vm516, %v648, 0
        %1166 = vmatprep.subr.mxu0 0.0
        %1167 = vmatpush1.msra.mxu0 %v253
        %1168 = vmatprep.subr.mxu0 0.0
        %1169 = vmatpush1.msra.mxu0 0.0
        %1170 = vmatprep.subr.mxu0 0.0
        %1171 = vmatpush1.msra.mxu0 0.0
        %1172 = vmatprep.subr.mxu0 0.0
        %1173 = vmatpush1.msra.mxu0 0.0
        %1174 = vmatprep.subr.mxu0 0.0
        %1175 = vmatpush1.msra.mxu0 0.0
        %1176 = vmatprep.subr.mxu0 0.0
        %1177 = vmatpush1.msra.mxu0 0.0
        %1178 = vmatprep.subr.mxu0 0.0
        %1179 = vmatpush1.msra.mxu0 0.0
        %1180 = vmatprep.subr.mxu0 0.0
        %1181 = vmatpush1.msra.mxu0 0.0
        %1182 = vmatprep.subr.mxu0 0.0
        %1183 = vmatpush1.msra.mxu0 0.0
        %1184 = vmatprep.subr.mxu0 0.0
        %1185 = vmatpush1.msra.mxu0 0.0
        %1186 = vmatprep.subr.mxu0 0.0
        %1187 = vmatpush1.msra.mxu0 0.0
        %1188 = vmatprep.subr.mxu0 0.0
        %1189 = vmatpush1.msra.mxu0 0.0
        %1190 = vmatprep.subr.mxu0 0.0
        %1191 = vmatpush1.msra.mxu0 0.0
        %1192 = vmatprep.subr.mxu0 0.0
        %1193 = vmatpush1.msra.mxu0 0.0
        %1194 = vmatprep.subr.mxu0 0.0
        %1195 = vmatpush1.msra.mxu0 0.0
        %1196 = vmatprep.subr.mxu0 0.0
        %1197 = vmatpush1.msra.mxu0 0.0
        %1198 = vmatprep.subr.mxu0 0.0
        %1199 = vmatpush1.msra.mxu0 0.0
        %1200 = vmatprep.subr.mxu0 0.0
        %1201 = vmatpush1.msra.mxu0 0.0
        %1202 = vmatprep.subr.mxu0 0.0
        %1203 = vmatpush1.msra.mxu0 0.0
        %1204 = vmatprep.subr.mxu0 0.0
        %1205 = vmatpush1.msra.mxu0 0.0
        %1206 = vmatprep.subr.mxu0 0.0
        %1207 = vmatpush1.msra.mxu0 0.0
        %1208 = vmatprep.subr.mxu0 0.0
        %1209 = vmatpush1.msra.mxu0 0.0
        %1210 = vmatprep.subr.mxu0 0.0
        %1211 = vmatpush1.msra.mxu0 0.0
        %1212 = vmatprep.subr.mxu0 0.0
        %1213 = vmatpush1.msra.mxu0 0.0
        %1214 = vmatprep.subr.mxu0 0.0
        %1215 = vmatpush1.msra.mxu0 0.0
        %1216 = vmatprep.subr.mxu0 0.0
        %1217 = vmatpush1.msra.mxu0 0.0
        %1218 = vmatprep.subr.mxu0 0.0
        %1219 = vmatpush1.msra.mxu0 0.0
        %1220 = vmatprep.subr.mxu0 0.0
        %1221 = vmatpush1.msra.mxu0 0.0
        %1222 = vmatprep.subr.mxu0 0.0
        %1223 = vmatpush1.msra.mxu0 0.0
        %1224 = vmatprep.subr.mxu0 0.0
        %1225 = vmatpush1.msra.mxu0 0.0
        %1226 = vmatprep.subr.mxu0 0.0
        %1227 = vmatpush1.msra.mxu0 0.0
        %1228 = vmatprep.subr.mxu0 0.0
        %1229 = vmatpush1.msra.mxu0 0.0
        %1230 = vmatprep.mubr.f32.mxu0 0.0
        %1231 = vmatmul.mubr.f32.gmra.mrb[0].mxu0 %v1164
        %v1232 = vpop.f32.mrb[0].mxu0
        %v1233 = vadd.f32 0.0, %v1232
        %v1234 = vpop.f32.mrb[0].mxu0
        %1235 = vdwg.mxu0
        %v1236 = vrcp.pop %v659
        %v1238 = vrot.slane %v1236, 1
        %v1239 = vrot.slane %v1236, 2
        %v1240 = vrot.slane %v1236, 3
        %v1241 = vrot.slane %v1236, 4
        %v1242 = vrot.slane %v1236, 5
        %v1243 = vrot.slane %v1236, 6
        %v1244 = vrot.slane %v1236, 7
        %v1253 = vmul.f32 %v729, %v1236
        %v1254 = vmul.f32 %v801, %v1238
        %v1255 = vmul.f32 %v873, %v1239
        %v1256 = vmul.f32 %v945, %v1240
        %v1257 = vmul.f32 %v1017, %v1241
        %v1258 = vmul.f32 %v1089, %v1242
        %v1259 = vmul.f32 %v1161, %v1243
        %v1260 = vmul.f32 %v1233, %v1244
        %v1269 = vrot.slane %v1254, 7
        %v1270 = vsel %vm501, %v1269, %v1253
        %v1271 = vrot.slane %v1255, 6
        %v1272 = vsel %vm503, %v1271, %v1270
        %v1273 = vrot.slane %v1256, 5
        %v1274 = vsel %vm505, %v1273, %v1272
        %v1275 = vrot.slane %v1257, 4
        %v1276 = vsel %vm507, %v1275, %v1274
        %v1277 = vrot.slane %v1258, 3
        %v1278 = vsel %vm509, %v1277, %v1276
        %v1279 = vrot.slane %v1259, 2
        %v1280 = vsel %vm511, %v1279, %v1278
        %v1281 = vrot.slane %v1260, 1
        %v1282 = vsel %vm513, %v1281, %v1280
        %1284 = vst.msk [vmem:[%s244] sm:$0xff] %vm263, %v1282
        %s1285 = sand.u32 %s142, 1
        %s1286 = scalar_lea.sflag [#allocation5], %s1285
        %s1287 = sand.u32 %s142, 1
        %s1288 = smul.addr %s1287, 8
        %s1289 = scalar_lea.vmem [#allocation6], %s1288
        // Predicated region
        $region45: #{attention_module.1} parent=39 // pred_check
          %p1290 = pneg %p152
        $region46: #{attention_module.1} parent=39 // pred_check_branch
          %1292 = sbr.rel (%p1290) target = $region48
        $region47: #{attention_module.1} parent=39 // pred_region
          %s1294 = ssub.s32 128, 128
          %1295 = vsyncadd %s1286, %s1294
          %s1296 = smul.addr %s24, 128
          %s1297 = scalar_lea.hbm %s5, %s1296
          %s1299 = sshll.u32 %s1289, 4
          %s1300 = int_to_ptr.vmem [resolvable:$true] %s1299
          %1302 = dma.vmem_to_hbm [thread:$0]  %s1300, 128, %s1297, %s1286
        $region48: #{attention_module.1} parent=39 // pred_fallthru
          _
      $region40: #{attention_module.1} parent=5 // pred_fallthru
        _
      %p1303 = scmp.le.s32.totalorder 2, %s19
      // Predicated region
      $region49: #{attention_module.1} parent=5 // pred_check
        %p1304 = pneg %p1303
      $region50: #{attention_module.1} parent=5 // pred_check_branch
        %1306 = sbr.rel (%p1304) target = $region52
      $region51: #{attention_module.1} parent=5 // pred_region
        %s1307 = ssub.s32 %s19, 2
        // Predicated region
        $region53: #{attention_module.1} parent=51 // pred_check
          %p1308 = pneg %p158
        $region54: #{attention_module.1} parent=51 // pred_check_branch
          %1310 = sbr.rel (%p1308) target = $region56
        $region55: #{attention_module.1} parent=51 // pred_region
          %s1311 = sand.u32 %s143, 1
          %s1312 = scalar_lea.sflag [#allocation5], %s1311
          %s1313 = sand.u32 %s143, 1
          %s1314 = smul.addr %s1313, 8
          %s1315 = scalar_lea.vmem [#allocation6], %s1314
          %1316 = dma.done %s1312, 128
        $region56: #{attention_module.1} parent=51 // pred_fallthru
          _
      $region52: #{attention_module.1} parent=5 // pred_fallthru
        _
    $region6: #{attention_module.1} parent=1 // loop_footer
      %s23 = sadd.s32 1, %s19
    $region7: #{attention_module.1} parent=1 // loop_footer_branch
      %18 = sbr.rel target = $region3
    $region8: #{attention_module.1} parent=1 // loop_exit
      _
    %1317 = vsyncpa [#allocation4], 1
    %s1318 = scalar_lea.sflag [#allocation4], 1
    %1319 = vsyncpa %s1318, 1
    %1320 = vsyncpa [#allocation5], 1
    %s1321 = scalar_lea.sflag [#allocation5], 1
    %1322 = vsyncpa %s1321, 1

</llo_original>
